<compile_context>
chip_gen: v7x
topology: tpu7x:2x2x1
jax: 0.10.0
libtpu: 0.0.40
codegen_flags: <defaults>
</compile_context>

<pallas_src>
import functools

import jax
import jax.numpy as jnp
import numpy as np
from jax import lax
from jax.experimental import pallas as pl
from jax.experimental.pallas import tpu as pltpu

_LANE = 128            # uint8 lane width
_SUBLANE_U8 = 32       # uint8 sublane packing
_MAX_MASKS_PER_STEP = 8  # cap on the in-kernel unroll over masks


def _round_up(x, m):
    return (x + m - 1) // m * m


def _vmem_block_budget():
    """Per-output-block byte budget (the output is the only pipelined buffer,
    double-buffered).  Derived from the chip's physical VMEM when queryable."""
    try:
        cap = int(pltpu.get_tpu_info().vmem_capacity_bytes)
    except Exception:  # interpret mode / older jax — fall back to v7x-safe value
        cap = 64 << 20
    return max(2 << 20, min(16 << 20, cap // 8))


def _choose_tiles(n_masks, H, W, budget_bytes):
    """Pick (TH, TN, h_pad, w_pad, n_pad): row tile, masks-per-step, padded dims."""
    w_pad = _round_up(W, _LANE)
    h_ceil = _round_up(H, _SUBLANE_U8)

    max_rows = max(_SUBLANE_U8,
                   (budget_bytes // max(w_pad, 1)) // _SUBLANE_U8 * _SUBLANE_U8)
    th = min(h_ceil, max_rows)

    tn = max(1, min(n_masks, _MAX_MASKS_PER_STEP,
                    budget_bytes // max(th * w_pad, 1)))

    h_pad = _round_up(H, th)
    n_pad = _round_up(n_masks, tn)

    # Give v7x's two TensorCores something to shard when the whole job would
    # otherwise be one grid step (a second cheap step costs nothing on 1-TC chips).
    if (n_pad // tn) * (h_pad // th) < 2 and th >= 2 * _SUBLANE_U8:
        th = _round_up(th // 2, _SUBLANE_U8)
        h_pad = _round_up(H, th)

    return th, tn, h_pad, w_pad, n_pad


def _bbox_mask_kernel(bbox_ref, out_ref, *, tn, img_h, img_w):
    """Rasterize TN masks' (TH, W_pad) row-tile.

    bbox_ref: SMEM int32[4 * n_pad] flat (top, left, h, w) table.
    out_ref : VMEM uint8[TN, TH, W_pad] block of the (n_pad, h_pad, w_pad) output.
    """
    g = pl.program_id(0)          # mask-group index
    i = pl.program_id(1)          # row-tile index
    _, th, tw = out_ref.shape

    row0 = i * th
    row1 = row0 + th

    # Hoisted per-tile iotas (tiny: (TH,1) and (1,TW)); reused by every mask.
    rows = row0 + lax.broadcasted_iota(jnp.int32, (th, 1), 0)
    cols = lax.broadcasted_iota(jnp.int32, (1, tw), 1)

    for t in range(tn):           # static unroll over packed masks
        base = (g * tn + t) * 4
        top = bbox_ref[base]
        left = bbox_ref[base + 1]
        h = bbox_ref[base + 2]
        w = bbox_ref[base + 3]

        # Scalar tile classification (pure SMEM/sreg work).
        no_overlap = (row1 <= top) | (row0 >= top + h) | (h <= 0) | (w <= 0)
        # Fast full-fill path is clamped to the REAL image extent; padded
        # rows/cols may get 1s but the wrapper crops them off.
        fully_inside = ((row0 >= top)
                        & (jnp.minimum(row1, img_h) <= top + h)
                        & (left <= 0)
                        & (left + w >= min(img_w, tw)))

        cond_zero = no_overlap
        cond_ones = jnp.logical_not(no_overlap) & fully_inside
        cond_mix = jnp.logical_not(no_overlap) & jnp.logical_not(fully_inside)

        @pl.when(cond_zero)
        def _():
            out_ref[t, ...] = jnp.zeros((th, tw), out_ref.dtype)

        @pl.when(cond_ones)
        def _():
            out_ref[t, ...] = jnp.ones((th, tw), out_ref.dtype)

        @pl.when(cond_mix)
        def _():
            # Separable predicate: one unsigned range-check per axis
            # ((idx - start) u< extent merges both bounds); boolean AND then a
            # single pack to uint8 — no int32 full-tile intermediate.
            row_in = (rows - top).astype(jnp.uint32) < h.astype(jnp.uint32)
            col_in = (cols - left).astype(jnp.uint32) < w.astype(jnp.uint32)
            out_ref[t, ...] = (row_in & col_in).astype(out_ref.dtype)


def bbox2mask_pallas(mask_size, bboxes):
    """Pallas equivalent of bbox2mask, batched.

    mask_size: (H, W). bboxes: int32 (4,) or (N, 4) rows of (top, left, h, w).
    Returns uint8 masks of shape (H, W, 1) or (N, H, W, 1) ('1' = hole).
    """
    H, W = int(mask_size[0]), int(mask_size[1])
    bboxes = jnp.asarray(bboxes, dtype=jnp.int32)
    single = bboxes.ndim == 1
    if single:
        bboxes = bboxes[None, :]
    n_masks = int(bboxes.shape[0])

    budget = _vmem_block_budget()
    th, tn, h_pad, w_pad, n_pad = _choose_tiles(n_masks, H, W, budget)

    if n_pad != n_masks:
        pad = jnp.zeros((n_pad - n_masks, 4), jnp.int32)  # h=w=0 -> zeros fill
        bbox_tbl = jnp.concatenate([bboxes, pad], axis=0)
    else:
        bbox_tbl = bboxes

    grid = (n_pad // tn, h_pad // th)
    kernel = functools.partial(_bbox_mask_kernel, tn=tn, img_h=H, img_w=W)

    masks = pl.pallas_call(
        kernel,
        out_shape=jax.ShapeDtypeStruct((n_pad, h_pad, w_pad), jnp.uint8),
        grid_spec=pltpu.PrefetchScalarGridSpec(
            num_scalar_prefetch=1,          # flat bbox table -> SMEM
            grid=grid,
            in_specs=[],
            out_specs=pl.BlockSpec((tn, th, w_pad),
                                   lambda g, i, bbox_ref: (g, i, 0)),
        ),
        compiler_params=pltpu.CompilerParams(
            dimension_semantics=("parallel", "parallel"),
            vmem_limit_bytes=int(3 * budget)),
    )(bbox_tbl.reshape(-1))

    if (n_pad, h_pad, w_pad) != (n_masks, H, W):
        # TODO(synk): for unaligned shapes this crop is an extra HBM copy; fuse
        # it into the consumer if the padded layout can be carried downstream.
        masks = masks[:n_masks, :H, :W]
    masks = masks.reshape(n_masks, H, W, 1)
    return masks[0] if single else masks


def random_bbox_jax(key, img_shape, max_bbox_shape, max_bbox_delta=40,
                    min_margin=20):
    """JAX re-implementation of random_bbox (np.random.randint [lo, hi) semantics)."""
    if not isinstance(max_bbox_shape, tuple):
        max_bbox_shape = (max_bbox_shape, max_bbox_shape)
    if not isinstance(max_bbox_delta, tuple):
        max_bbox_delta = (max_bbox_delta, max_bbox_delta)
    if not isinstance(min_margin, tuple):
        min_margin = (min_margin, min_margin)

    img_h, img_w = img_shape[:2]
    max_mask_h, max_mask_w = max_bbox_shape
    max_delta_h, max_delta_w = max_bbox_delta
    margin_h, margin_w = min_margin

    if max_mask_h > img_h or max_mask_w > img_w:
        raise ValueError("mask shape should be smaller than image shape")
    if max_delta_h // 2 * 2 >= max_mask_h or max_delta_w // 2 * 2 >= max_mask_w:
        raise ValueError("mask delta should be smaller than mask shape")
    if img_h - max_mask_h < 2 * margin_h or img_w - max_mask_w < 2 * margin_w:
        raise ValueError("margin cannot be satisfied")

    max_top = img_h - margin_h - max_mask_h
    max_left = img_w - margin_w - max_mask_w

    k1, k2, k3, k4 = jax.random.split(key, 4)
    top = jax.random.randint(k1, (), margin_h, max_top)
    left = jax.random.randint(k2, (), margin_w, max_left)
    delta_top = jax.random.randint(k3, (), 0, max_delta_h // 2 + 1)
    delta_left = jax.random.randint(k4, (), 0, max_delta_w // 2 + 1)

    top = top + delta_top
    left = left + delta_left
    h = max_mask_h - delta_top
    w = max_mask_w - delta_left
    return jnp.stack([top, left, h, w]).astype(jnp.int32)


class GenerateRandomMaskPallas:
    """Pallas port of GenerateRandomMask ('bbox' and 'whole' modes).

    __call__(mask_size, key)             -> (H, W, 1) uint8
    __call__(mask_size, key, num_masks)  -> (num_masks, H, W, 1) uint8
    All masks of one call are rasterized by a single pallas_call.
    """

    def __init__(self, mask_mode: str = "bbox", mask_config: dict | None = None):
        self.mask_mode = mask_mode
        self.mask_config = mask_config or {}

    def __call__(self, mask_size, key, num_masks=None):
        H, W = int(mask_size[0]), int(mask_size[1])
        n = 1 if num_masks is None else int(num_masks)
        if self.mask_mode == "bbox":
            keys = jax.random.split(key, n)
            bboxes = jax.vmap(
                lambda k: random_bbox_jax(k, img_shape=mask_size,
                                          **self.mask_config))(keys)
            masks = bbox2mask_pallas(mask_size, bboxes)
        elif self.mask_mode == "whole":
            # Trivially known answer: never cheaper than not launching a kernel.
            masks = jnp.ones((n, H, W, 1), dtype=jnp.uint8)
        else:
            # TODO(synk): 'irregular'/'ff' modes use PIL/cv2 polyline rasterization
            # with data-dependent loop counts; no clean Pallas equivalent.
            raise NotImplementedError(
                f"Mask mode {self.mask_mode} has not been implemented.")
        return masks[0] if num_masks is None else masks


def _reference_bbox2mask(img_shape, bbox):
    height, width = img_shape[:2]
    mask = np.zeros((height, width, 1), dtype=np.uint8)
    mask[bbox[0]:bbox[0] + bbox[2], bbox[1]:bbox[1] + bbox[3], :] = 1
    return mask


if __name__ == "__main__":
    key = jax.random.PRNGKey(0)

    # --- single 128x128 bbox mask (aligned shape) ---
    mask_size = (128, 128)
    cfg = {"max_bbox_shape": (64, 64)}
    module = GenerateRandomMaskPallas("bbox", cfg)
    mask = jax.block_until_ready(module(mask_size, key))
    assert mask.shape == (128, 128, 1) and mask.dtype == jnp.uint8
    bbox = np.asarray(random_bbox_jax(jax.random.split(key, 1)[0], mask_size, **cfg))
    np.testing.assert_array_equal(
        np.asarray(mask),
        _reference_bbox2mask(mask_size, tuple(int(v) for v in bbox)))

    # --- batch of 4 masks rasterized in ONE pallas_call (mask packing path) ---
    nb = 4
    masks = jax.block_until_ready(module(mask_size, key, num_masks=nb))
    assert masks.shape == (nb, 128, 128, 1)
    keys = jax.random.split(key, nb)
    for i in range(nb):
        bb = np.asarray(random_bbox_jax(keys[i], mask_size, **cfg))
        np.testing.assert_array_equal(
            np.asarray(masks[i]),
            _reference_bbox2mask(mask_size, tuple(int(v) for v in bb)))

    # --- batch of 3 (exercises the n-padding path when TN > 1) ---
    masks3 = jax.block_until_ready(module(mask_size, key, num_masks=3))
    assert masks3.shape == (3, 128, 128, 1)
    keys3 = jax.random.split(key, 3)
    for i in range(3):
        bb = np.asarray(random_bbox_jax(keys3[i], mask_size, **cfg))
        np.testing.assert_array_equal(
            np.asarray(masks3[i]),
            _reference_bbox2mask(mask_size, tuple(int(v) for v in bb)))

    # --- unaligned shape: exercises padding + boundary-tile path + crop ---
    odd_size = (100, 200)
    odd_cfg = {"max_bbox_shape": (48, 48), "max_bbox_delta": 20, "min_margin": 10}
    odd_module = GenerateRandomMaskPallas("bbox", odd_cfg)
    key2 = jax.random.PRNGKey(1)
    odd_mask = jax.block_until_ready(odd_module(odd_size, key2))
    assert odd_mask.shape == (100, 200, 1) and odd_mask.dtype == jnp.uint8
    bb = np.asarray(random_bbox_jax(jax.random.split(key2, 1)[0], odd_size, **odd_cfg))
    np.testing.assert_array_equal(
        np.asarray(odd_mask),
        _reference_bbox2mask(odd_size, tuple(int(v) for v in bb)))

    # --- direct bbox2mask check with a bbox spanning the full width
    #     (hits the ones-fill fast path clamped to the real image extent) ---
    full_w_bbox = jnp.asarray([10, 0, 40, 200], dtype=jnp.int32)
    full_w_mask = jax.block_until_ready(bbox2mask_pallas(odd_size, full_w_bbox))
    np.testing.assert_array_equal(
        np.asarray(full_w_mask), _reference_bbox2mask(odd_size, (10, 0, 40, 200)))

    # --- 'whole' mode: kernel bypass, pure jnp.ones ---
    whole = jax.block_until_ready(GenerateRandomMaskPallas("whole")(mask_size, key))
    assert whole.shape == (128, 128, 1)
    assert int(np.asarray(whole, dtype=np.int64).sum()) == 128 * 128
    whole_odd = jax.block_until_ready(GenerateRandomMaskPallas("whole")(odd_size, key))
    assert int(np.asarray(whole_odd, dtype=np.int64).sum()) == 100 * 200

    print("KERNEL_OK")
</pallas_src>

<mosaic_0001>
module attributes {stable_mosaic.version = 11 : i64} {
  func.func @_bbox_mask_kernel(%arg0: i32, %arg1: i32, %arg2: memref<4xi32, #tpu.memory_space<smem>>, %arg3: memref<1x64x128xi8, #tpu.memory_space<vmem>>) attributes {dimension_semantics = [#tpu.dimension_semantics<parallel>, #tpu.dimension_semantics<parallel>], iteration_bounds = array<i64: 1, 2>, scalar_prefetch = 1 : i64, scratch_operands = 0 : i64, tpu.core_type = #tpu.core_type<tc>, window_params = [{transform_indices = @transform_0, window_bounds = array<i64: 1, 64, 128>}]} {
    %c64_i32 = arith.constant 64 : i32
    %0 = arith.muli %arg1, %c64_i32 : i32
    %c64_i32_0 = arith.constant 64 : i32
    %1 = arith.addi %0, %c64_i32_0 : i32
    %2 = tpu.iota {dimensions = array<i32: 0>} : vector<64x1xi32>
    %3 = vector.broadcast %0 : i32 to vector<64x1xi32>
    %4 = arith.addi %3, %2 : vector<64x1xi32>
    %5 = tpu.iota {dimensions = array<i32: 1>} : vector<1x128xi32>
    %c1_i32 = arith.constant 1 : i32
    %6 = arith.muli %arg0, %c1_i32 : i32
    %c0_i32 = arith.constant 0 : i32
    %7 = arith.addi %6, %c0_i32 : i32
    %c4_i32 = arith.constant 4 : i32
    %8 = arith.muli %7, %c4_i32 : i32
    %9 = arith.index_cast %8 : i32 to index
    %10 = memref.load %arg2[%9] : memref<4xi32, #tpu.memory_space<smem>>
    %c1_i32_1 = arith.constant 1 : i32
    %11 = arith.addi %8, %c1_i32_1 : i32
    %12 = arith.index_cast %11 : i32 to index
    %13 = memref.load %arg2[%12] : memref<4xi32, #tpu.memory_space<smem>>
    %c2_i32 = arith.constant 2 : i32
    %14 = arith.addi %8, %c2_i32 : i32
    %15 = arith.index_cast %14 : i32 to index
    %16 = memref.load %arg2[%15] : memref<4xi32, #tpu.memory_space<smem>>
    %c3_i32 = arith.constant 3 : i32
    %17 = arith.addi %8, %c3_i32 : i32
    %18 = arith.index_cast %17 : i32 to index
    %19 = memref.load %arg2[%18] : memref<4xi32, #tpu.memory_space<smem>>
    %20 = arith.cmpi sle, %1, %10 : i32
    %21 = arith.addi %10, %16 : i32
    %22 = arith.cmpi sge, %0, %21 : i32
    %23 = arith.ori %20, %22 : i1
    %c0_i32_2 = arith.constant 0 : i32
    %24 = arith.cmpi sle, %16, %c0_i32_2 : i32
    %25 = arith.ori %23, %24 : i1
    %c0_i32_3 = arith.constant 0 : i32
    %26 = arith.cmpi sle, %19, %c0_i32_3 : i32
    %27 = arith.ori %25, %26 : i1
    %28 = arith.cmpi sge, %0, %10 : i32
    %c128_i32 = arith.constant 128 : i32
    %29 = arith.minsi %1, %c128_i32 : i32
    %30 = arith.addi %10, %16 : i32
    %31 = arith.cmpi sle, %29, %30 : i32
    %32 = arith.andi %28, %31 : i1
    %c0_i32_4 = arith.constant 0 : i32
    %33 = arith.cmpi sle, %13, %c0_i32_4 : i32
    %34 = arith.andi %32, %33 : i1
    %35 = arith.addi %13, %19 : i32
    %c128_i32_5 = arith.constant 128 : i32
    %36 = arith.cmpi sge, %35, %c128_i32_5 : i32
    %37 = arith.andi %34, %36 : i1
    %true = arith.constant true
    %38 = arith.xori %27, %true : i1
    %39 = arith.andi %38, %37 : i1
    %true_6 = arith.constant true
    %40 = arith.xori %27, %true_6 : i1
    %true_7 = arith.constant true
    %41 = arith.xori %37, %true_7 : i1
    %42 = arith.andi %40, %41 : i1
    %43 = arith.extui %27 : i1 to i32
    %c0_i32_8 = arith.constant 0 : i32
    %44 = arith.cmpi ne, %43, %c0_i32_8 : i32
    scf.if %44 {
      %c0_i8 = arith.constant 0 : i8
      %49 = vector.broadcast %c0_i8 : i8 to vector<64x128xi8>
      %c0 = arith.constant 0 : index
      %c0_11 = arith.constant 0 : index
      %c0_12 = arith.constant 0 : index
      %50 = vector.load %arg3[%c0, %c0_11, %c0_12] : memref<1x64x128xi8, #tpu.memory_space<vmem>>, vector<1x64x128xi8>
      %51 = vector.shape_cast %50 : vector<1x64x128xi8> to vector<64x128xi8>
      %52 = vector.shape_cast %49 : vector<64x128xi8> to vector<1x64x128xi8>
      tpu.vector_store %arg3[%c0, %c0_11, %c0_12], %52 {strides = array<i32>} : memref<1x64x128xi8, #tpu.memory_space<vmem>>, vector<1x64x128xi8>,
    } else {
    }
    %45 = arith.extui %39 : i1 to i32
    %c0_i32_9 = arith.constant 0 : i32
    %46 = arith.cmpi ne, %45, %c0_i32_9 : i32
    scf.if %46 {
      %c1_i8 = arith.constant 1 : i8
      %49 = vector.broadcast %c1_i8 : i8 to vector<64x128xi8>
      %c0 = arith.constant 0 : index
      %c0_11 = arith.constant 0 : index
      %c0_12 = arith.constant 0 : index
      %50 = vector.load %arg3[%c0, %c0_11, %c0_12] : memref<1x64x128xi8, #tpu.memory_space<vmem>>, vector<1x64x128xi8>
      %51 = vector.shape_cast %50 : vector<1x64x128xi8> to vector<64x128xi8>
      %52 = vector.shape_cast %49 : vector<64x128xi8> to vector<1x64x128xi8>
      tpu.vector_store %arg3[%c0, %c0_11, %c0_12], %52 {strides = array<i32>} : memref<1x64x128xi8, #tpu.memory_space<vmem>>, vector<1x64x128xi8>,
    } else {
    }
    %47 = arith.extui %42 : i1 to i32
    %c0_i32_10 = arith.constant 0 : i32
    %48 = arith.cmpi ne, %47, %c0_i32_10 : i32
    scf.if %48 {
      %49 = vector.broadcast %10 : i32 to vector<64x1xi32>
      %50 = arith.subi %4, %49 : vector<64x1xi32>
      %51 = vector.broadcast %16 : i32 to vector<64x1xi32>
      %52 = arith.cmpi ult, %50, %51 : vector<64x1xi32>
      %53 = vector.broadcast %13 : i32 to vector<1x128xi32>
      %54 = arith.subi %5, %53 : vector<1x128xi32>
      %55 = vector.broadcast %19 : i32 to vector<1x128xi32>
      %56 = arith.cmpi ult, %54, %55 : vector<1x128xi32>
      %57 = vector.broadcast %52 : vector<64x1xi1> to vector<64x128xi1>
      %58 = vector.broadcast %56 : vector<1x128xi1> to vector<64x128xi1>
      %59 = arith.andi %57, %58 : vector<64x128xi1>
      %60 = arith.extui %59 : vector<64x128xi1> to vector<64x128xi8>
      %c0 = arith.constant 0 : index
      %c0_11 = arith.constant 0 : index
      %c0_12 = arith.constant 0 : index
      %61 = vector.load %arg3[%c0, %c0_11, %c0_12] : memref<1x64x128xi8, #tpu.memory_space<vmem>>, vector<1x64x128xi8>
      %62 = vector.shape_cast %61 : vector<1x64x128xi8> to vector<64x128xi8>
      %63 = vector.shape_cast %60 : vector<64x128xi8> to vector<1x64x128xi8>
      tpu.vector_store %arg3[%c0, %c0_11, %c0_12], %63 {strides = array<i32>} : memref<1x64x128xi8, #tpu.memory_space<vmem>>, vector<1x64x128xi8>,
    } else {
    }
    return
  }
  func.func @transform_0(%arg0: i32, %arg1: i32, %arg2: memref<4xi32, #tpu.memory_space<smem>>) -> (i32, i32, i32) {
    %c0_i32 = arith.constant 0 : i32
    %c0_i32_0 = arith.constant 0 : i32
    return %arg0, %arg1, %c0_i32 : i32, i32, i32
  }
}

</mosaic_0001>

<llo_original>
// kernel: tpu_custom_call.1
$region0: #{tpu_custom_call.1}
  #allocation0 [shape = 'u32[]', space=smem, size = 0x4, offset = 0x4, fixed_abs, tag = 'smem constant byte address 0x4 - core index']
  #allocation1 [shape = 'u32[144,128]{1,0:T(1,128)}', space=vmem, size = 0x12000, scoped, tag = 'internal scratch']
  #allocation2 [shape = 's32[1]{0}', space=sflag, size = 0x4, scoped, tag = 'scoped memory for tpu_custom_call.1']
  #allocation3 [shape = 'u8[512]{0}', space=smem, size = 0x200, scoped, tag = 'prefetched SMEM operand 0']
  %s0 = inlined_call_operand.hbm [shape: s32[4], index: 0, kind: input, shape index: {}]
  %s1 = inlined_call_operand.hbm [shape: u8[1,128,128], index: 1, kind: output, shape index: {}]
  %s2 = sld [smem:[#allocation0]]
  $region37: #{tpu_custom_call.1} parent=0
    _
  %s4 = ssub.s32 1, %s2
  %s5 = scalar_select 0, %s4, %s2
  %7 = dma.hbm_to_smem %s0, 16, [#allocation3], [#allocation2]
  %8 = dma.done [#allocation2], 16
  %9 = sfence
  $region1: #{tpu_custom_call.1} parent=0
    #allocation4 [shape = 'u8[16384]{0}', space=vmem, size = 0x4000, scoped, tag = 'output window, operand 0']
    #allocation5 [shape = 's32[2]{0}', space=sflag, size = 0x8, scoped, tag = 'scoped memory for tpu_custom_call.1']
    %10 = vsyncpa [#allocation5], 0
    %s11 = scalar_lea.sflag [#allocation5], 1
    %12 = vsyncpa %s11, 0
    loop: start=0, step=1, limit=3
    $region2: #{tpu_custom_call.1} parent=1 // loop_pre_header
      _
    $region3: #{tpu_custom_call.1} parent=1 // loop_header
      %s14 = sphi 0, %s18
      %p15 = scmp.ge.s32.totalorder %s14, 3
      %s20 = sphi 0, %s30
      %s21 = sphi 0, %s26
      %s22 = sphi 0, %s20
      %s23 = sphi 0, %s21
      %s35 = sphi 0, %s37
      %s38 = sphi 0, %s35
      %s48 = sphi 0, %s38
    $region4: #{tpu_custom_call.1} parent=1 // loop_header_branch
      %17 = sbr.rel (%p15) target = $region8
    $region5: #{tpu_custom_call.1} parent=1 // loop_body
      %s19 = ssub.s32 %s14, 1
      %s24 = sadd.s32 1, %s21
      %p25 = scmp.ge.s32.totalorder %s24, 2
      %s26 = scalar_select %p25, 0, %s24
      %s27 = sadd.s32 1, %s20
      %s28 = scalar_select %p25, %s27, %s20
      %p29 = scmp.ge.s32.totalorder %s28, 1
      %s30 = scalar_select %p29, 0, %s28
      %s31 = ssub.s32 %s20, %s30
      %s32 = ssub.s32 %s21, %s26
      %s33 = sor.u32 %s31, %s32
      %p34 = scmp.eq.s32.totalorder %s33, 0
      %s36 = sadd.s32 %s35, 1
      %s37 = scalar_select %p34, %s35, %s36
      %p39 = pneg %p34
      %p40 = scmp.eq.s32.totalorder %s14, 1
      %p41 = por %p39, %p40
      %p42 = scmp.ne.s32.totalorder %s35, %s38
      %p43 = scmp.eq.s32.totalorder %s14, 0
      %p44 = por %p42, %p43
      %p45 = scmp.ne.s32.totalorder %s35, %s38
      %p46 = scmp.eq.s32.totalorder %s19, 1
      %p47 = por %p45, %p46
      %p49 = scmp.ne.s32.totalorder %s38, %s48
      %p50 = scmp.eq.s32.totalorder %s19, 0
      %p51 = por %p49, %p50
      %p52 = scmp.lt.s32.totalorder %s14, 2
      // Predicated region
      $region9: #{tpu_custom_call.1} parent=5 // pred_check
        %p53 = pneg %p52
      $region10: #{tpu_custom_call.1} parent=5 // pred_check_branch
        %55 = sbr.rel (%p53) target = $region12
      $region11: #{tpu_custom_call.1} parent=5 // pred_region
        %p56 = pneg %p44
        %p57 = pneg %p41
        %s58 = sand.u32 %s35, 1
        %s59 = scalar_lea.sflag [#allocation5], %s58
        %s60 = sand.u32 %s35, 1
        %s61 = smul.addr %s60, 16
        %s62 = scalar_lea.vmem [#allocation4], %s61
        %s63 = smul.u32 2, %s21
        %s66 = smul.u32 %s21, 64
        %s67 = sadd.s32 %s66, 64
        %v68 = vlaneseq
        %v69 = vshrl.u32 %v68, 7
        %v70 = vadd.s32 %v69, 8
        %v71 = vadd.s32 %v69, 16
        %v72 = vadd.s32 %v69, 24
        %v73 = vadd.s32 %v69, 32
        %v74 = vadd.s32 %v69, 40
        %v75 = vadd.s32 %v69, 48
        %v76 = vadd.s32 %v69, 56
        %v77 = vstv %s66
        %v78 = vadd.s32 %v77, %v69
        %v79 = vadd.s32 %v77, %v70
        %v80 = vadd.s32 %v77, %v71
        %v81 = vadd.s32 %v77, %v72
        %v82 = vadd.s32 %v77, %v73
        %v83 = vadd.s32 %v77, %v74
        %v84 = vadd.s32 %v77, %v75
        %v85 = vadd.s32 %v77, %v76
        %v86 = vlaneseq
        %v87 = vand.u32 %v86, 127
        %s88 = smul.u32 %s20, 4
        %s89 = sld [smem:[#allocation3 + %s88]]
        %s90 = sadd.s32 %s88, 1
        %s91 = sld [smem:[#allocation3 + %s90]]
        %s92 = sadd.s32 %s88, 2
        %s93 = sld [smem:[#allocation3 + %s92]]
        %s94 = sadd.s32 %s88, 3
        %s95 = sld [smem:[#allocation3 + %s94]]
        %p96 = scmp.le.s32.totalorder %s67, %s89
        %s97 = sadd.s32 %s89, %s93
        %p98 = scmp.ge.s32.totalorder %s66, %s97
        %p99 = por %p96, %p98
        %p100 = scmp.le.s32.totalorder %s93, 0
        %p101 = por %p99, %p100
        %p102 = scmp.le.s32.totalorder %s95, 0
        %p103 = por %p101, %p102
        %p104 = scmp.ge.s32.totalorder %s66, %s89
        %p105 = scmp.lt.s32.totalorder %s67, 128
        %s106 = scalar_select %p105, %s67, 128
        %p107 = scmp.le.s32.totalorder %s106, %s97
        %p108 = pnand %p104, %p107
        %p109 = pneg %p108
        %p110 = scmp.le.s32.totalorder %s91, 0
        %p111 = pnand %p109, %p110
        %p112 = pneg %p111
        %s113 = sadd.s32 %s91, %s95
        %p114 = scmp.ge.s32.totalorder %s113, 128
        %p115 = pnand %p112, %p114
        %p116 = pneg %p115
        %p117 = pneg %p103
        %p118 = pnand %p117, %p116
        %p119 = pneg %p118
        %p120 = pneg %p116
        %p121 = pnand %p117, %p120
        %p122 = pneg %p121
        // Predicated region
        $region13: #{tpu_custom_call.1} parent=11 // pred_check
          %p123 = pneg %p103
        $region14: #{tpu_custom_call.1} parent=11 // pred_check_branch
          %125 = sbr.rel (%p123) target = $region16
        $region15: #{tpu_custom_call.1} parent=11 // pred_region
          %126 = vst [vmem:[%s62] sm:$0xff] 0
          %127 = vst [vmem:[%s62 + $0x8] sm:$0xff] 0
        $region16: #{tpu_custom_call.1} parent=11 // pred_fallthru
          _
        // Predicated region
        $region17: #{tpu_custom_call.1} parent=11 // pred_check
          _
        $region18: #{tpu_custom_call.1} parent=11 // pred_check_branch
          %129 = sbr.rel (%p118) target = $region20
        $region19: #{tpu_custom_call.1} parent=11 // pred_region
          %130 = vst [vmem:[%s62] sm:$0xff] 16843009
          %131 = vst [vmem:[%s62 + $0x8] sm:$0xff] 16843009
        $region20: #{tpu_custom_call.1} parent=11 // pred_fallthru
          _
        // Predicated region
        $region21: #{tpu_custom_call.1} parent=11 // pred_check
          _
        $region22: #{tpu_custom_call.1} parent=11 // pred_check_branch
          %133 = sbr.rel (%p121) target = $region24
        $region23: #{tpu_custom_call.1} parent=11 // pred_region
          %v134 = vstv %s89
          %v135 = vsub.s32 %v78, %v134
          %v136 = vsub.s32 %v79, %v134
          %v137 = vsub.s32 %v80, %v134
          %v138 = vsub.s32 %v81, %v134
          %v139 = vsub.s32 %v82, %v134
          %v140 = vsub.s32 %v83, %v134
          %v141 = vsub.s32 %v84, %v134
          %v142 = vsub.s32 %v85, %v134
          %v143 = vstv %s93
          %vm144 = vcmp.lt.u32.totalorder %v135, %v143
          %vm145 = vcmp.lt.u32.totalorder %v136, %v143
          %vm146 = vcmp.lt.u32.totalorder %v137, %v143
          %vm147 = vcmp.lt.u32.totalorder %v138, %v143
          %vm148 = vcmp.lt.u32.totalorder %v139, %v143
          %vm149 = vcmp.lt.u32.totalorder %v140, %v143
          %vm150 = vcmp.lt.u32.totalorder %v141, %v143
          %vm151 = vcmp.lt.u32.totalorder %v142, %v143
          %v152 = vstv %s91
          %v153 = vsub.s32 %v87, %v152
          %v154 = vstv %s95
          %vm155 = vcmp.lt.u32.totalorder %v153, %v154
          %v156 = vsel %vm144, 1, 0
          %v157 = vsel %vm145, 1, 0
          %v158 = vsel %vm146, 1, 0
          %v159 = vsel %vm147, 1, 0
          %v160 = vsel %vm148, 1, 0
          %v161 = vsel %vm149, 1, 0
          %v162 = vsel %vm150, 1, 0
          %v163 = vsel %vm151, 1, 0
          %vm164 = vcmp.eq.s32.totalorder %v156, 1
          %vm165 = vcmp.eq.s32.totalorder %v157, 1
          %vm166 = vcmp.eq.s32.totalorder %v158, 1
          %vm167 = vcmp.eq.s32.totalorder %v159, 1
          %vm168 = vcmp.eq.s32.totalorder %v160, 1
          %vm169 = vcmp.eq.s32.totalorder %v161, 1
          %vm170 = vcmp.eq.s32.totalorder %v162, 1
          %vm171 = vcmp.eq.s32.totalorder %v163, 1
          %v172 = vsel %vm155, 1, 0
          %vm173 = vcmp.eq.s32.totalorder %v172, 1
          %vm174 = vmand %vm164, %vm173
          %vm175 = vmand %vm165, %vm173
          %vm176 = vmand %vm166, %vm173
          %vm177 = vmand %vm167, %vm173
          %vm178 = vmand %vm168, %vm173
          %vm179 = vmand %vm169, %vm173
          %vm180 = vmand %vm170, %vm173
          %vm181 = vmand %vm171, %vm173
          %vm182 = vmpackc.low %vm175, %vm174
          %vm183 = vmpackc.low %vm177, %vm176
          %vm184 = vmpackc.even %vm183, %vm182
          %vm185 = vmpackc.low %vm179, %vm178
          %vm186 = vmpackc.low %vm181, %vm180
          %vm187 = vmpackc.even %vm186, %vm185
          %v188 = vsel %vm184, 16843009, 0
          %v189 = vsel %vm187, 16843009, 0
          %190 = vst [vmem:[%s62] sm:$0xff] %v188
          %191 = vst [vmem:[%s62 + $0x8] sm:$0xff] %v189
        $region24: #{tpu_custom_call.1} parent=11 // pred_fallthru
          _
        %s192 = sand.u32 %s35, 1
        %s193 = scalar_lea.sflag [#allocation5], %s192
        %s194 = sand.u32 %s35, 1
        %s195 = smul.addr %s194, 16
        %s196 = scalar_lea.vmem [#allocation4], %s195
        // Predicated region
        $region25: #{tpu_custom_call.1} parent=11 // pred_check
          %p197 = pneg %p41
        $region26: #{tpu_custom_call.1} parent=11 // pred_check_branch
          %199 = sbr.rel (%p197) target = $region28
        $region27: #{tpu_custom_call.1} parent=11 // pred_region
          %s200 = smul.u32 2, %s21
          %s202 = ssub.s32 256, 256
          %203 = vsyncadd %s193, %s202
          %s204 = smul.addr %s20, 4
          %s205 = sadd.s32 %s200, %s204
          %s206 = smul.addr %s205, 128
          %s207 = scalar_lea.hbm %s1, %s206
          %s208 = sshll.u32 %s196, 4
          %s209 = int_to_ptr.vmem [resolvable:$true] %s208
          %214 = dma.vmem_to_hbm [thread:$0]  %s209, 256, %s207, %s193, 128, 128, 8
        $region28: #{tpu_custom_call.1} parent=11 // pred_fallthru
          _
      $region12: #{tpu_custom_call.1} parent=5 // pred_fallthru
        _
      %p215 = scmp.le.s32.totalorder 1, %s14
      // Predicated region
      $region29: #{tpu_custom_call.1} parent=5 // pred_check
        %p216 = pneg %p215
      $region30: #{tpu_custom_call.1} parent=5 // pred_check_branch
        %218 = sbr.rel (%p216) target = $region32
      $region31: #{tpu_custom_call.1} parent=5 // pred_region
        %s219 = ssub.s32 %s14, 1
        // Predicated region
        $region33: #{tpu_custom_call.1} parent=31 // pred_check
          %p220 = pneg %p47
        $region34: #{tpu_custom_call.1} parent=31 // pred_check_branch
          %222 = sbr.rel (%p220) target = $region36
        $region35: #{tpu_custom_call.1} parent=31 // pred_region
          %s223 = sand.u32 %s38, 1
          %s224 = scalar_lea.sflag [#allocation5], %s223
          %s225 = sand.u32 %s38, 1
          %s226 = smul.addr %s225, 16
          %s227 = scalar_lea.vmem [#allocation4], %s226
          %228 = dma.done %s224, 256
        $region36: #{tpu_custom_call.1} parent=31 // pred_fallthru
          _
      $region32: #{tpu_custom_call.1} parent=5 // pred_fallthru
        _
    $region6: #{tpu_custom_call.1} parent=1 // loop_footer
      %s18 = sadd.s32 1, %s14
    $region7: #{tpu_custom_call.1} parent=1 // loop_footer_branch
      %13 = sbr.rel target = $region3
    $region8: #{tpu_custom_call.1} parent=1 // loop_exit
      _
    %229 = vsyncpa [#allocation5], 1
    %s230 = scalar_lea.sflag [#allocation5], 1
    %231 = vsyncpa %s230, 1

</llo_original>
